<compile_context>
chip_gen: v5e
topology: v5e:2x2
jax: 0.10.0
libtpu: 0.0.40
codegen_flags: <defaults>
</compile_context>

<pallas_src>
import functools

import jax
import jax.numpy as jnp
from jax import lax
from jax.experimental import pallas as pl
from jax.experimental.pallas import tpu as pltpu


def _conv1d_kernel(x_ref, w_ref, b_ref, out_ref, *,
                   kernel_size, stride, dilation, l_out):
    # x_ref  : (bt, L_pad, C_in)   zero-padded, channels-last
    # w_ref  : (K*C_in, C_out)     row index = k*C_in + c  (== weight[o, c, k])
    # b_ref  : (1, C_out)
    # out_ref: (bt, l_out, C_out)
    xb = x_ref[...]                                   # (bt, L_pad, C_in)

    span = stride * (l_out - 1) + 1
    # im2col: static K taps, each a static (strided) slice along the length
    # axis; concatenated along the feature (lane) axis.
    taps = [xb[:, k * dilation: k * dilation + span: stride, :]
            for k in range(kernel_size)]              # K x (bt, l_out, C_in)
    xcol = taps[0] if kernel_size == 1 else jnp.concatenate(taps, axis=-1)

    # Single fused MXU matmul for the whole batch tile:
    #   (bt, l_out, K*C_in) . (K*C_in, C_out) -> (bt, l_out, C_out)
    y = lax.dot_general(
        xcol, w_ref[...],
        dimension_numbers=(((2,), (0,)), ((), ())),
        preferred_element_type=jnp.float32)
    y = y + b_ref[...]                                # broadcast (1, C_out)

    out_ref[...] = y.astype(out_ref.dtype)


def _pick_batch_block(B, l_pad, l_out, c_in, c_out, k, itemsize=4,
                      budget_bytes=8 << 20):
    """Largest divisor of B whose per-tile working set fits a VMEM budget."""
    per_b = (l_pad * c_in            # input tile
             + l_out * k * c_in      # im2col intermediate
             + 2 * l_out * c_out     # f32 matmul result + output tile
             ) * itemsize
    best = 1
    for bt in range(1, B + 1):
        if B % bt == 0 and bt * per_b <= budget_bytes:
            best = bt
    return best


def conv_norm(x, weight, bias, *, stride=1, padding=None, dilation=1,
              batch_block=None):
    """ConvNorm forward: x (B, C_in, L) -> (B, C_out, L_out)."""
    B, C_in, L = x.shape
    C_out, C_in_w, K = weight.shape
    assert C_in_w == C_in
    if padding is None:
        assert K % 2 == 1
        padding = (dilation * (K - 1)) // 2
    l_out = (L + 2 * padding - dilation * (K - 1) - 1) // stride + 1

    # Layout plumbing outside the kernel: channels-last + zero pad on length.
    x_cl = jnp.transpose(x, (0, 2, 1))                        # (B, L, C_in)
    x_pad = jnp.pad(x_cl, ((0, 0), (padding, padding), (0, 0)))
    l_pad = L + 2 * padding

    # Flatten weight tap-major to match the in-kernel im2col row order.
    w_mat = jnp.transpose(weight, (2, 1, 0)).reshape(K * C_in, C_out)
    b_mat = bias.reshape(1, C_out)

    if batch_block is None:
        batch_block = _pick_batch_block(B, l_pad, l_out, C_in, C_out, K,
                                        itemsize=x.dtype.itemsize)
    bt = batch_block
    assert B % bt == 0, "batch_block must divide the batch size"
    grid = (B // bt,)

    kernel = functools.partial(_conv1d_kernel, kernel_size=K, stride=stride,
                               dilation=dilation, l_out=l_out)

    out_cl = pl.pallas_call(
        kernel,
        out_shape=jax.ShapeDtypeStruct((B, l_out, C_out), x.dtype),
        grid_spec=pltpu.PrefetchScalarGridSpec(
            num_scalar_prefetch=0,
            grid=grid,
            in_specs=[
                pl.BlockSpec((bt, l_pad, C_in), lambda i: (i, 0, 0)),   # x
                pl.BlockSpec((K * C_in, C_out), lambda i: (0, 0)),      # W
                pl.BlockSpec((1, C_out), lambda i: (0, 0)),             # bias
            ],
            out_specs=pl.BlockSpec((bt, l_out, C_out), lambda i: (i, 0, 0)),
        ),
        compiler_params=pltpu.CompilerParams(
            dimension_semantics=("parallel",)),
    )(x_pad, w_mat, b_mat)

    # back to PyTorch's channels-first layout
    return jnp.transpose(out_cl, (0, 2, 1))


def _reference(x, weight, bias, *, stride=1, padding=None, dilation=1):
    """Pure-JAX replica of torch.nn.Conv1d for verification."""
    C_out, C_in, K = weight.shape
    if padding is None:
        padding = (dilation * (K - 1)) // 2
    out = lax.conv_general_dilated(
        x, weight,
        window_strides=(stride,),
        padding=[(padding, padding)],
        rhs_dilation=(dilation,),
        dimension_numbers=("NCH", "OIH", "NCH"),
    )
    return out + bias[None, :, None]


if __name__ == "__main__":
    B, C_in, C_out, L = 2, 4, 8, 16

    key = jax.random.PRNGKey(0)
    k_x, k_w1, k_b1, k_w3, k_b3 = jax.random.split(key, 5)
    x = jax.random.normal(k_x, (B, C_in, L), jnp.float32)

    # case 1: module defaults (kernel_size=1, stride=1, dilation=1)
    w1 = 0.2 * jax.random.normal(k_w1, (C_out, C_in, 1), jnp.float32)
    b1 = 0.2 * jax.random.normal(k_b1, (C_out,), jnp.float32)
    out1 = conv_norm(x, w1, b1)

    # case 2: kernel_size=3 with "same" auto-padding
    w3 = 0.2 * jax.random.normal(k_w3, (C_out, C_in, 3), jnp.float32)
    b3 = 0.2 * jax.random.normal(k_b3, (C_out,), jnp.float32)
    out3 = conv_norm(x, w3, b3)

    # case 3: dilation=2, explicit batch blocking of 1
    w3d = 0.2 * jax.random.normal(k_w3, (C_out, C_in, 3), jnp.float32)
    out3d = conv_norm(x, w3d, b3, dilation=2, batch_block=1)

    out1, out3, out3d = jax.block_until_ready((out1, out3, out3d))

    ref1 = _reference(x, w1, b1)
    ref3 = _reference(x, w3, b3)
    ref3d = _reference(x, w3d, b3, dilation=2)

    assert out1.shape == (B, C_out, L)
    assert out3.shape == (B, C_out, L)
    assert out3d.shape == (B, C_out, L)
    assert jnp.allclose(out1, ref1, atol=1e-5, rtol=1e-5)
    assert jnp.allclose(out3, ref3, atol=1e-5, rtol=1e-5)
    assert jnp.allclose(out3d, ref3d, atol=1e-5, rtol=1e-5)

    print("KERNEL_OK")
</pallas_src>

<mosaic_0001>
module attributes {stable_mosaic.version = 11 : i64} {
  func.func @_conv1d_kernel(%arg0: i32, %arg1: memref<2x16x4xf32, #tpu.memory_space<vmem>>, %arg2: memref<4x8xf32, #tpu.memory_space<vmem>>, %arg3: memref<1x8xf32, #tpu.memory_space<vmem>>, %arg4: memref<2x16x8xf32, #tpu.memory_space<vmem>>) attributes {dimension_semantics = [#tpu.dimension_semantics<parallel>], iteration_bounds = array<i64: 1>, scalar_prefetch = 0 : i64, scratch_operands = 0 : i64, tpu.core_type = #tpu.core_type<tc>, window_params = [{transform_indices = @transform_0, window_bounds = array<i64: 2, 16, 4>}, {pipeline_mode = #tpu.pipeline_mode<synchronous>, transform_indices = @transform_1, window_bounds = array<i64: 4, 8>}, {pipeline_mode = #tpu.pipeline_mode<synchronous>, transform_indices = @transform_2, window_bounds = array<i64: 1, 8>}, {transform_indices = @transform_3, window_bounds = array<i64: 2, 16, 8>}]} {
    %c0 = arith.constant 0 : index
    %c0_0 = arith.constant 0 : index
    %c0_1 = arith.constant 0 : index
    %0 = vector.load %arg1[%c0, %c0_0, %c0_1] : memref<2x16x4xf32, #tpu.memory_space<vmem>>, vector<2x16x4xf32>
    %c0_2 = arith.constant 0 : index
    %c0_3 = arith.constant 0 : index
    %1 = vector.load %arg2[%c0_2, %c0_3] : memref<4x8xf32, #tpu.memory_space<vmem>>, vector<4x8xf32>
    %cst = arith.constant dense<0.000000e+00> : vector<2x16x8xf32>
    %2 = tpu.matmul %0, %1, %cst {dimension_numbers = #tpu.dot_dimension_numbers<[2], [0], [0, 1], [1], [0, 0, 0, 1, 1, 1], [], []>} : vector<2x16x4xf32>, vector<4x8xf32>, vector<2x16x8xf32> -> vector<2x16x8xf32>
    %c0_4 = arith.constant 0 : index
    %c0_5 = arith.constant 0 : index
    %3 = vector.load %arg3[%c0_4, %c0_5] : memref<1x8xf32, #tpu.memory_space<vmem>>, vector<1x8xf32>
    %4 = vector.shape_cast %3 : vector<1x8xf32> to vector<1x1x8xf32>
    %5 = vector.broadcast %4 : vector<1x1x8xf32> to vector<2x16x8xf32>
    %6 = arith.addf %2, %5 : vector<2x16x8xf32>
    %c0_6 = arith.constant 0 : index
    %c0_7 = arith.constant 0 : index
    %c0_8 = arith.constant 0 : index
    %7 = vector.load %arg4[%c0_6, %c0_7, %c0_8] : memref<2x16x8xf32, #tpu.memory_space<vmem>>, vector<2x16x8xf32>
    tpu.vector_store %arg4[%c0_6, %c0_7, %c0_8], %6 {strides = array<i32>} : memref<2x16x8xf32, #tpu.memory_space<vmem>>, vector<2x16x8xf32>,
    return
  }
  func.func @transform_0(%arg0: i32) -> (i32, i32, i32) {
    %c0_i32 = arith.constant 0 : i32
    %c0_i32_0 = arith.constant 0 : i32
    %c0_i32_1 = arith.constant 0 : i32
    return %arg0, %c0_i32, %c0_i32_0 : i32, i32, i32
  }
  func.func @transform_1(%arg0: i32) -> (i32, i32) {
    %c0_i32 = arith.constant 0 : i32
    %c0_i32_0 = arith.constant 0 : i32
    %c0_i32_1 = arith.constant 0 : i32
    return %c0_i32, %c0_i32_0 : i32, i32
  }
  func.func @transform_2(%arg0: i32) -> (i32, i32) {
    %c0_i32 = arith.constant 0 : i32
    %c0_i32_0 = arith.constant 0 : i32
    %c0_i32_1 = arith.constant 0 : i32
    return %c0_i32, %c0_i32_0 : i32, i32
  }
  func.func @transform_3(%arg0: i32) -> (i32, i32, i32) {
    %c0_i32 = arith.constant 0 : i32
    %c0_i32_0 = arith.constant 0 : i32
    %c0_i32_1 = arith.constant 0 : i32
    return %arg0, %c0_i32, %c0_i32_0 : i32, i32, i32
  }
}

</mosaic_0001>

<llo_original>
// kernel: tpu_custom_call.1
$region0: #{tpu_custom_call.1}
  #allocation0 [shape = 'u32[]', space=smem, size = 0x4, offset = 0x4, fixed_abs, tag = 'smem constant byte address 0x4 - core index']
  #allocation1 [shape = 'u32[72,128]{1,0:T(1,128)}', space=vmem, size = 0x9000, scoped, tag = 'internal scratch']
  %s0 = inlined_call_operand.vmem [shape: f32[2,16,4], index: 0, kind: input, shape index: {}]
  %s1 = inlined_call_operand.vmem [shape: f32[4,8], index: 1, kind: input, shape index: {}]
  %s2 = inlined_call_operand.vmem [shape: f32[1,8], index: 2, kind: input, shape index: {}]
  %s3 = inlined_call_operand.vmem [shape: f32[2,16,8], index: 3, kind: output, shape index: {}]
  %s4 = sld [smem:[#allocation0]]
  $region22: #{tpu_custom_call.1} parent=0
    _
  %s6 = ssub.s32 1, %s4
  %s7 = scalar_select 0, %s6, %s4
  // Predicated region
  $region2: #{tpu_custom_call.1} parent=0 // pred_check
    _
  $region3: #{tpu_custom_call.1} parent=0 // pred_check_branch
    %9 = sbr.rel (0) target = $region5
  $region4: #{tpu_custom_call.1} parent=0 // pred_region
    _
  $region5: #{tpu_custom_call.1} parent=0 // pred_fallthru
    _
  // Predicated region
  $region6: #{tpu_custom_call.1} parent=0 // pred_check
    _
  $region7: #{tpu_custom_call.1} parent=0 // pred_check_branch
    %11 = sbr.rel (0) target = $region9
  $region8: #{tpu_custom_call.1} parent=0 // pred_region
    _
  $region9: #{tpu_custom_call.1} parent=0 // pred_fallthru
    _
  // Predicated region
  $region10: #{tpu_custom_call.1} parent=0 // pred_check
    _
  $region11: #{tpu_custom_call.1} parent=0 // pred_check_branch
    %13 = sbr.rel (0) target = $region13
  $region12: #{tpu_custom_call.1} parent=0 // pred_region
    _
  $region13: #{tpu_custom_call.1} parent=0 // pred_fallthru
    _
  %v14 = vld [vmem:[%s0] sm:$0xff]
  %v15 = vld [vmem:[%s0 + $0x8] sm:$0xff]
  %v16 = vld [vmem:[%s0 + $0x10] sm:$0xff]
  %v17 = vld [vmem:[%s0 + $0x18] sm:$0xff]
  %v18 = vld [vmem:[%s1] sm:$0xf]
  %v19 = vld [vmem:[%s2] sm:$0x1]
  %v21 = vperm.slane %v19, 0
  %vm23 = vcmask 31744
  %v25 = vsel %vm23, %v14, 0
  %v28 = vsel %vm23, %v15, 0
  %v31 = vsel %vm23, %v16, 0
  %v34 = vsel %vm23, %v17, 0
  %vm36 = vcmask 1043456
  %v38 = vsel %vm36, %v18, 0
  %40 = vmatpush.msra.mxu0 0.0
  %41 = vmatpush.msra.mxu0 0.0
  %42 = vmatpush.msra.mxu0 0.0
  %43 = vmatpush.msra.mxu0 0.0
  %44 = vmatpush.msra.mxu0 0.0
  %45 = vmatpush.msra.mxu0 0.0
  %46 = vmatpush.msra.mxu0 0.0
  %47 = vmatpush.msra.mxu0 0.0
  %48 = vmatpush.msra.mxu0 0.0
  %49 = vmatpush.msra.mxu0 0.0
  %50 = vmatpush.msra.mxu0 0.0
  %51 = vmatpush.msra.mxu0 0.0
  %52 = vmatpush.msra.mxu0 0.0
  %53 = vmatpush.msra.mxu0 0.0
  %54 = vmatpush.msra.mxu0 0.0
  %55 = vmatpush.msra.mxu0 %v38
  %56 = vmatmul.f32.gmra.mxu0 %v25
  %v57 = vpop.f32.mrf.mxu0
  %v58 = vadd.f32 %v21, %v57
  %59 = vmatmul.f32.gmra.mxu0 %v28
  %v60 = vpop.f32.mrf.mxu0
  %v61 = vadd.f32 %v21, %v60
  %62 = vmatmul.f32.gmra.mxu0 %v31
  %v63 = vpop.f32.mrf.mxu0
  %v64 = vadd.f32 %v21, %v63
  %65 = vmatmul.f32.gmra.mxu0 %v34
  %v66 = vpop.f32.mrf.mxu0
  %v67 = vadd.f32 %v21, %v66
  %68 = vdwg.mxu0
  %vm69 = vcmask 64512
  %70 = vst.msk [vmem:[%s3] sm:$0xff] %vm69, %v58
  %71 = vst.msk [vmem:[%s3 + $0x8] sm:$0xff] %vm69, %v61
  %72 = vst.msk [vmem:[%s3 + $0x10] sm:$0xff] %vm69, %v64
  %73 = vst.msk [vmem:[%s3 + $0x18] sm:$0xff] %vm69, %v67
  // Predicated region
  $region14: #{tpu_custom_call.1} parent=0 // pred_check
    _
  $region15: #{tpu_custom_call.1} parent=0 // pred_check_branch
    %75 = sbr.rel (0) target = $region17
  $region16: #{tpu_custom_call.1} parent=0 // pred_region
    _
  $region17: #{tpu_custom_call.1} parent=0 // pred_fallthru
    _
  // Predicated region
  $region18: #{tpu_custom_call.1} parent=0 // pred_check
    _
  $region19: #{tpu_custom_call.1} parent=0 // pred_check_branch
    %77 = sbr.rel (0) target = $region21
  $region20: #{tpu_custom_call.1} parent=0 // pred_region
    _
  $region21: #{tpu_custom_call.1} parent=0 // pred_fallthru
    _

</llo_original>
